<compile_context>
chip_gen: v6e
topology: v6e:2x2x1
jax: 0.10.0
libtpu: 0.0.40
codegen_flags: <defaults>
</compile_context>

<pallas_src>
import jax
import jax.numpy as jnp
from jax.experimental import pallas as pl
from jax.experimental.pallas import tpu as pltpu


LANE = 128                       # vreg lane width
BLOCK_COLS = 1024                # lane-dense block width (8 vregs, multiple of 128)
_SMALL_BYTES = 4 * 1024 * 1024   # whole-array single-block threshold (fits any gen)


def _select_tiling():
    """Generation-dependent (block_rows, vmem_limit_bytes).

    Defaults are v7x-safe (64 MiB physical VMEM, 32 MiB scoped default):
    (1024, 1024) f32 blocks -> 4 MiB/block, ~16 MiB live double-buffered.
    On 128 MiB-VMEM chips (v5e / v6e) we double the block and raise the scoped
    VMEM limit so the larger tiles do not OOM.
    """
    block_rows = 1024
    vmem_limit = 32 * 1024 * 1024
    try:
        info = pltpu.get_tpu_info()
        vmem_bytes = getattr(info, "vmem_capacity_bytes", None)
        if vmem_bytes is not None and vmem_bytes >= 96 * 1024 * 1024:
            block_rows = 2048
            vmem_limit = 64 * 1024 * 1024
    except Exception:
        # Unknown / mocked hardware: keep the conservative v7x-safe tiling.
        pass
    return block_rows, vmem_limit


def _copy_kernel(x_ref, o_ref):
    # Pure pass-through on one lane-dense tile (or the whole array).
    o_ref[...] = x_ref[...]


def _whole_array_copy(x):
    """Single-block copy: the entire array is one VMEM-resident block."""
    return pl.pallas_call(
        _copy_kernel,
        out_shape=jax.ShapeDtypeStruct(x.shape, x.dtype),
    )(x)


def _tiled_copy(x2d, block_rows, vmem_limit):
    """Row-tiled pipelined copy of a lane-dense (rows, BLOCK_COLS) slab.

    Uses a cdiv grid: a ragged trailing row-block is bounds-masked by Pallas,
    so no host-side row padding or output slicing is needed.
    """
    rows, cols = x2d.shape
    if rows <= block_rows:
        # Single grid step: full row extent is legal for any row count.
        block_rows = rows
    # rows > block_rows => block_rows stays a multiple of 8 (sublane-aligned).
    grid = (pl.cdiv(rows, block_rows),)
    return pl.pallas_call(
        _copy_kernel,
        out_shape=jax.ShapeDtypeStruct((rows, cols), x2d.dtype),
        grid=grid,
        in_specs=[pl.BlockSpec((block_rows, cols), lambda i: (i, 0))],
        out_specs=pl.BlockSpec((block_rows, cols), lambda i: (i, 0)),
        compiler_params=pltpu.CompilerParams(
            dimension_semantics=("parallel",),
            vmem_limit_bytes=vmem_limit,
        ),
    )(x2d)


def pallas_copy(x: jax.Array) -> jax.Array:
    """Identity copy of `x` through VMEM using a tiled, pipelined Pallas kernel.

    Fast path (element count divisible by 1024): reshape (free for a contiguous
    array) to a lane-dense (rows, 1024) slab and tile over rows with a cdiv
    grid — no padding, no slicing, pure 2N-byte HBM traffic.
    Small unaligned arrays are copied as a single whole-array block; only large
    unaligned arrays pay a < 1024-element pad plus trailing slice.
    """
    orig_shape = x.shape
    n = x.size
    if n == 0:
        return x

    block_rows, vmem_limit = _select_tiling()

    if n % BLOCK_COLS == 0:
        # Lane-aligned fast path: no host-side pad / slice at all.
        rows = n // BLOCK_COLS
        x2d = x.reshape(rows, BLOCK_COLS)
        out2d = _tiled_copy(x2d, block_rows, vmem_limit)
        return out2d.reshape(orig_shape)

    if n * x.dtype.itemsize <= _SMALL_BYTES:
        # Small, unaligned: one full-array block, no pad / slice.
        return _whole_array_copy(x)

    # Rare fallback: large array whose element count is not lane-aligned.
    # Pads by < BLOCK_COLS elements (<= 4 KiB of zeros for f32), then slices.
    pad = (-n) % BLOCK_COLS
    flat = jnp.pad(x.reshape(-1), (0, pad))
    rows = (n + pad) // BLOCK_COLS
    out2d = _tiled_copy(flat.reshape(rows, BLOCK_COLS), block_rows, vmem_limit)
    return out2d.reshape(-1)[:n].reshape(orig_shape)


class CBAMBlock:
    """JAX/Pallas equivalent of the (empty) PyTorch CBAMBlock."""

    def __init__(self):
        # The PyTorch __init__ registers no parameters.
        pass

    def forward(self, x):
        # The reference forward body is empty and returns None. We therefore
        # launch no Pallas work here: any copy whose result is discarded would
        # be dead HBM traffic.
        return None

    def __call__(self, x):
        return self.forward(x)


if __name__ == "__main__":
    key = jax.random.PRNGKey(0)
    k1, k2, k3 = jax.random.split(key, 3)

    # Small NCHW input consistent with a CBAM-style block.
    x = jax.random.normal(k1, (2, 4, 16, 16), dtype=jnp.float32)

    # Module-level forward matches the PyTorch semantics (returns None) and
    # launches no kernel.
    block = CBAMBlock()
    assert block(x) is None

    # 1) Lane-aligned fast path (2048 elems -> (2, 1024), single-step grid).
    y = pallas_copy(x)
    jax.block_until_ready(y)
    assert y.shape == x.shape and y.dtype == x.dtype
    assert bool(jnp.all(y == x))

    # 2) Multi-step grid with a ragged trailing row-block (2056 rows), to
    #    exercise the pipelined cdiv-grid path. Still small (~8 MiB).
    #    NOTE: for actual bandwidth benchmarking use >= 64-256 MiB inputs.
    x_multi = jax.random.normal(k2, (2056, 1024), dtype=jnp.float32)
    y_multi = pallas_copy(x_multi)
    jax.block_until_ready(y_multi)
    assert bool(jnp.all(y_multi == x_multi))

    # 3) Unaligned small array -> whole-array single-block path (no pad/slice).
    x_odd = jax.random.normal(k3, (3, 5, 7), dtype=jnp.float32)
    y_odd = pallas_copy(x_odd)
    jax.block_until_ready(y_odd)
    assert bool(jnp.all(y_odd == x_odd))

    print("KERNEL_OK")
</pallas_src>

<mosaic_0001>
module attributes {stable_mosaic.version = 11 : i64} {
  func.func @_copy_kernel(%arg0: i32, %arg1: memref<2x1024xf32, #tpu.memory_space<vmem>>, %arg2: memref<2x1024xf32, #tpu.memory_space<vmem>>) attributes {dimension_semantics = [#tpu.dimension_semantics<parallel>], iteration_bounds = array<i64: 1>, scalar_prefetch = 0 : i64, scratch_operands = 0 : i64, tpu.core_type = #tpu.core_type<tc>, window_params = [{transform_indices = @transform_0, window_bounds = array<i64: 2, 1024>}, {transform_indices = @transform_1, window_bounds = array<i64: 2, 1024>}]} {
    %c0 = arith.constant 0 : index
    %c0_0 = arith.constant 0 : index
    %0 = vector.load %arg1[%c0, %c0_0] : memref<2x1024xf32, #tpu.memory_space<vmem>>, vector<2x1024xf32>
    %c0_1 = arith.constant 0 : index
    %c0_2 = arith.constant 0 : index
    %1 = vector.load %arg2[%c0_1, %c0_2] : memref<2x1024xf32, #tpu.memory_space<vmem>>, vector<2x1024xf32>
    tpu.vector_store %arg2[%c0_1, %c0_2], %0 {strides = array<i32>} : memref<2x1024xf32, #tpu.memory_space<vmem>>, vector<2x1024xf32>,
    return
  }
  func.func @transform_0(%arg0: i32) -> (i32, i32) {
    %c0_i32 = arith.constant 0 : i32
    %c0_i32_0 = arith.constant 0 : i32
    return %arg0, %c0_i32 : i32, i32
  }
  func.func @transform_1(%arg0: i32) -> (i32, i32) {
    %c0_i32 = arith.constant 0 : i32
    %c0_i32_0 = arith.constant 0 : i32
    return %arg0, %c0_i32 : i32, i32
  }
}

</mosaic_0001>

<llo_original>
// kernel: tpu_custom_call.1
$region0: #{tpu_custom_call.1}
  #allocation0 [shape = 'u32[]', space=smem, size = 0x4, offset = 0x4, fixed_abs, tag = 'smem constant byte address 0x4 - core index']
  #allocation1 [shape = 'u32[144,128]{1,0:T(1,128)}', space=vmem, size = 0x12000, scoped, tag = 'internal scratch']
  %s0 = inlined_call_operand.hbm [shape: f32[2,1024], index: 0, kind: input, shape index: {}]
  %s1 = inlined_call_operand.hbm [shape: f32[2,1024], index: 1, kind: output, shape index: {}]
  %s2 = sld [smem:[#allocation0]]
  $region18: #{tpu_custom_call.1} parent=0
    _
  %s4 = ssub.s32 1, %s2
  %s5 = scalar_select 0, %s4, %s2
  $region1: #{tpu_custom_call.1} parent=0
    #allocation2 [shape = 'u8[8192]{0}', space=vmem, size = 0x2000, scoped, tag = 'input window, operand 0, single buffered']
    #allocation3 [shape = 's32[1]{0}', space=sflag, size = 0x4, scoped, tag = 'scoped memory for tpu_custom_call.1']
    #allocation4 [shape = 's32[1]{0}', space=sflag, size = 0x4, scoped, tag = 'scoped memory for tpu_custom_call.1']
    #allocation5 [shape = 'u8[8192]{0}', space=vmem, size = 0x2000, scoped, tag = 'output window, operand 0, single buffered']
    %6 = vsyncpa [#allocation3], 0
    %7 = vsyncpa [#allocation4], 0
    // Predicated region
    $region2: #{tpu_custom_call.1} parent=1 // pred_check
      _
    $region3: #{tpu_custom_call.1} parent=1 // pred_check_branch
      %9 = sbr.rel (0) target = $region5
    $region4: #{tpu_custom_call.1} parent=1 // pred_region
      %s11 = ssub.s32 256, 256
      %12 = vsyncadd [#allocation3], %s11
      %s14 = sshll.u32 [#allocation2], 4
      %s15 = int_to_ptr.vmem [resolvable:$true] %s14
      %17 = dma.hbm_to_vmem [thread:$0]  %s0, 256, %s15, [#allocation3]
    $region5: #{tpu_custom_call.1} parent=1 // pred_fallthru
      _
    // Predicated region
    $region6: #{tpu_custom_call.1} parent=1 // pred_check
      _
    $region7: #{tpu_custom_call.1} parent=1 // pred_check_branch
      %19 = sbr.rel (0) target = $region9
    $region8: #{tpu_custom_call.1} parent=1 // pred_region
      %20 = dma.done [#allocation3], 256
    $region9: #{tpu_custom_call.1} parent=1 // pred_fallthru
      _
    %v21 = vld [vmem:[#allocation2] sm:$0xff]
    %v22 = vld [vmem:[#allocation2 + $0x8] sm:$0xff]
    %23 = vst [vmem:[#allocation5] sm:$0xff] %v21
    %24 = vst [vmem:[#allocation5 + $0x8] sm:$0xff] %v22
    // Predicated region
    $region10: #{tpu_custom_call.1} parent=1 // pred_check
      _
    $region11: #{tpu_custom_call.1} parent=1 // pred_check_branch
      %26 = sbr.rel (0) target = $region13
    $region12: #{tpu_custom_call.1} parent=1 // pred_region
      %s28 = ssub.s32 256, 256
      %29 = vsyncadd [#allocation4], %s28
      %s31 = sshll.u32 [#allocation5], 4
      %s32 = int_to_ptr.vmem [resolvable:$true] %s31
      %34 = dma.vmem_to_hbm [thread:$0]  %s32, 256, %s1, [#allocation4]
    $region13: #{tpu_custom_call.1} parent=1 // pred_fallthru
      _
    // Predicated region
    $region14: #{tpu_custom_call.1} parent=1 // pred_check
      _
    $region15: #{tpu_custom_call.1} parent=1 // pred_check_branch
      %36 = sbr.rel (0) target = $region17
    $region16: #{tpu_custom_call.1} parent=1 // pred_region
      %37 = dma.done [#allocation4], 256
    $region17: #{tpu_custom_call.1} parent=1 // pred_fallthru
      _
    %38 = vsyncpa [#allocation3], 1
    %39 = vsyncpa [#allocation4], 1

</llo_original>
